<compile_context>
chip_gen: v6e
topology: v6e:2x2x1
jax: 0.10.0
libtpu: 0.0.40
codegen_flags: <defaults>
</compile_context>

<pallas_src>
import functools

import jax
import jax.numpy as jnp
from jax.experimental import pallas as pl
from jax.experimental.pallas import tpu as pltpu

LANES = 128          # padded feature width inside the kernel
NUM_LAYERS = 6
DIMS = [(84, 45), (45, 25), (25, 8), (8, 25), (25, 45), (45, 84)]
IN_DIM = 84
BOTTLENECK = 8
SLOPE = 0.01
Z_OFF = 96           # bottleneck z lives in lanes [96, 104) of the output tile


def _round_up(x, m):
    return ((x + m - 1) // m) * m


def ae_kernel(x_ref, w_ref, b_ref, y_ref):
    """One batch tile: 6 fused bf16 matmuls (f32 accumulate), weights VMEM-resident.

    x_ref: (TB, 84) f32    w_ref: (6, 128, 128) bf16    b_ref: (8, 128) f32
    y_ref: (TB, 128) bf16  -- lanes 0:84 reconstruction, lanes 96:104 bottleneck z.
    """
    h = x_ref[...].astype(jnp.bfloat16)              # (TB, 84)
    z = None
    out = None
    for layer in range(NUM_LAYERS):
        if layer == 0:
            w = w_ref[0, :IN_DIM, :]                 # (84, 128) bf16, K = 84 matmul
        else:
            w = w_ref[layer]                         # (128, 128) bf16
        b = b_ref[pl.ds(layer, 1), :]                # (1, 128) f32
        y = jnp.dot(h, w, preferred_element_type=jnp.float32) + b
        if layer < NUM_LAYERS - 1:
            a = jnp.maximum(y, SLOPE * y)            # LeakyReLU(0.01), f32
            if layer == 2:
                z = a                                # (TB,128) f32, lanes >=8 exactly 0
            h = a.astype(jnp.bfloat16)
        else:
            out = y                                  # f32, lanes >=84 exactly 0
    # Stash z into lanes [96,104): z nonzero lanes 0:8 roll to 96:104, everything
    # else is exact zero on both operands, so the add is a pure lane-merge.
    out = out + pltpu.roll(z, shift=Z_OFF, axis=1)
    y_ref[...] = out.astype(y_ref.dtype)


def make_params(key):
    """torch.nn.Linear-style init (uniform +/- 1/sqrt(fan_in)).
    Weights stored already transposed: (in_features, out_features)."""
    params = []
    for fan_in, fan_out in DIMS:
        key, kw, kb = jax.random.split(key, 3)
        bound = 1.0 / jnp.sqrt(float(fan_in))
        w = jax.random.uniform(kw, (fan_in, fan_out), jnp.float32, -bound, bound)
        b = jax.random.uniform(kb, (fan_out,), jnp.float32, -bound, bound)
        params.append((w, b))
    return params


def pack_params(params):
    """Pack all layers into one zero-padded bf16 (6,128,128) weight slab and one
    f32 (8,128) bias slab (2 resident operands, ~200 KiB total)."""
    w_slab = jnp.zeros((NUM_LAYERS, LANES, LANES), jnp.float32)
    b_slab = jnp.zeros((8, LANES), jnp.float32)      # rows 6,7 unused (sublane pad)
    for i, (w, b) in enumerate(params):
        fin, fout = w.shape
        w_slab = w_slab.at[i, :fin, :fout].set(w)
        b_slab = b_slab.at[i, :fout].set(b)
    return w_slab.astype(jnp.bfloat16), b_slab


@functools.partial(jax.jit, static_argnames=("tb",))
def ae_forward(x, w_slab, b_slab, *, tb=4096):
    """Returns (x3, x6) = (bottleneck (B,8), reconstruction (B,84)) in float32."""
    B, F = x.shape
    assert F == IN_DIM
    # Batch tile: big enough to amortize per-step overhead, but keep >=~4 grid steps
    # when the batch allows so the v7x megacore "parallel" axis feeds both TCs.
    TB = max(8, min(tb, _round_up(-(-B // 4), 8)))
    grid = (pl.cdiv(B, TB),)

    flops = 2 * B * (IN_DIM * LANES + (NUM_LAYERS - 1) * LANES * LANES)
    bytes_accessed = (B * IN_DIM * 4                    # x in (f32)
                      + B * LANES * 2                   # fused y/z out (bf16)
                      + NUM_LAYERS * LANES * LANES * 2  # weight slab (bf16)
                      + 8 * LANES * 4)                  # bias slab (f32)

    y_pad = pl.pallas_call(
        ae_kernel,
        out_shape=jax.ShapeDtypeStruct((B, LANES), jnp.bfloat16),
        grid=grid,
        in_specs=[
            pl.BlockSpec((TB, IN_DIM), lambda i: (i, 0)),                   # x tile
            pl.BlockSpec((NUM_LAYERS, LANES, LANES), lambda i: (0, 0, 0)),  # weights (resident)
            pl.BlockSpec((8, LANES), lambda i: (0, 0)),                     # biases (resident)
        ],
        out_specs=pl.BlockSpec((TB, LANES), lambda i: (i, 0)),
        compiler_params=pltpu.CompilerParams(
            dimension_semantics=("parallel",),           # megacore-shard batch on v7x
        ),
        cost_estimate=pl.CostEstimate(
            flops=flops, transcendentals=0, bytes_accessed=bytes_accessed),
    )(x, w_slab, b_slab)

    y = y_pad[:, :IN_DIM].astype(jnp.float32)
    z = y_pad[:, Z_OFF:Z_OFF + BOTTLENECK].astype(jnp.float32)
    return z, y


def ae_reference(x, params):
    """Pure-JAX f32 reference matching the PyTorch module."""
    h = x
    acts = []
    for i, (w, b) in enumerate(params):
        h = h @ w + b
        if i < NUM_LAYERS - 1:
            h = jnp.where(h > 0, h, SLOPE * h)
        acts.append(h)
    return acts[2], acts[5]


if __name__ == "__main__":
    key = jax.random.PRNGKey(0)
    key, kx = jax.random.split(key)

    B = 16
    x = jax.random.normal(kx, (B, IN_DIM), jnp.float32)
    params = make_params(key)
    w_slab, b_slab = pack_params(params)

    z, y = ae_forward(x, w_slab, b_slab)
    z, y = jax.block_until_ready((z, y))

    z_ref, y_ref = ae_reference(x, params)
    assert z.shape == (B, BOTTLENECK) and y.shape == (B, IN_DIM)
    # bf16 matmul path vs f32 reference: loose tolerance.
    assert jnp.allclose(z, z_ref, atol=5e-2, rtol=5e-2)
    assert jnp.allclose(y, y_ref, atol=5e-2, rtol=5e-2)

    print("KERNEL_OK")
</pallas_src>

<mosaic_0001>
module attributes {stable_mosaic.version = 11 : i64} {
  func.func @ae_kernel(%arg0: i32, %arg1: memref<8x84xf32, #tpu.memory_space<vmem>>, %arg2: memref<6x128x128xbf16, #tpu.memory_space<vmem>>, %arg3: memref<8x128xf32, #tpu.memory_space<vmem>>, %arg4: memref<8x128xbf16, #tpu.memory_space<vmem>>) attributes {dimension_semantics = [#tpu.dimension_semantics<parallel>], iteration_bounds = array<i64: 2>, scalar_prefetch = 0 : i64, scratch_operands = 0 : i64, tpu.core_type = #tpu.core_type<tc>, window_params = [{transform_indices = @transform_0, window_bounds = array<i64: 8, 84>}, {pipeline_mode = #tpu.pipeline_mode<synchronous>, transform_indices = @transform_1, window_bounds = array<i64: 6, 128, 128>}, {pipeline_mode = #tpu.pipeline_mode<synchronous>, transform_indices = @transform_2, window_bounds = array<i64: 8, 128>}, {transform_indices = @transform_3, window_bounds = array<i64: 8, 128>}]} {
    %c0 = arith.constant 0 : index
    %c0_0 = arith.constant 0 : index
    %0 = vector.load %arg1[%c0, %c0_0] : memref<8x84xf32, #tpu.memory_space<vmem>>, vector<8x84xf32>
    %1 = arith.truncf %0 : vector<8x84xf32> to vector<8x84xbf16>
    %c0_1 = arith.constant 0 : index
    %c0_2 = arith.constant 0 : index
    %c0_3 = arith.constant 0 : index
    %2 = vector.load %arg2[%c0_1, %c0_2, %c0_3] : memref<6x128x128xbf16, #tpu.memory_space<vmem>>, vector<1x84x128xbf16>
    %3 = vector.shape_cast %2 : vector<1x84x128xbf16> to vector<84x128xbf16>
    %c0_4 = arith.constant 0 : index
    %c0_5 = arith.constant 0 : index
    %4 = vector.load %arg3[%c0_4, %c0_5] : memref<8x128xf32, #tpu.memory_space<vmem>>, vector<1x128xf32>
    %cst = arith.constant dense<0.000000e+00> : vector<8x128xf32>
    %5 = tpu.matmul %1, %3, %cst {dimension_numbers = #tpu.dot_dimension_numbers<[1], [0], [0], [1], [0, 0, 1, 1], [], []>} : vector<8x84xbf16>, vector<84x128xbf16>, vector<8x128xf32> -> vector<8x128xf32>
    %6 = vector.broadcast %4 : vector<1x128xf32> to vector<8x128xf32>
    %7 = arith.addf %5, %6 : vector<8x128xf32>
    %cst_6 = arith.constant 0.00999999977 : f32
    %8 = vector.broadcast %cst_6 : f32 to vector<8x128xf32>
    %9 = arith.mulf %8, %7 : vector<8x128xf32>
    %10 = arith.maximumf %7, %9 : vector<8x128xf32>
    %11 = arith.truncf %10 : vector<8x128xf32> to vector<8x128xbf16>
    %c1 = arith.constant 1 : index
    %c0_7 = arith.constant 0 : index
    %c0_8 = arith.constant 0 : index
    %12 = vector.load %arg2[%c1, %c0_7, %c0_8] : memref<6x128x128xbf16, #tpu.memory_space<vmem>>, vector<1x128x128xbf16>
    %13 = vector.shape_cast %12 : vector<1x128x128xbf16> to vector<128x128xbf16>
    %c1_9 = arith.constant 1 : index
    %c0_10 = arith.constant 0 : index
    %14 = vector.load %arg3[%c1_9, %c0_10] : memref<8x128xf32, #tpu.memory_space<vmem>>, vector<1x128xf32>
    %cst_11 = arith.constant dense<0.000000e+00> : vector<8x128xf32>
    %15 = tpu.matmul %11, %13, %cst_11 {dimension_numbers = #tpu.dot_dimension_numbers<[1], [0], [0], [1], [0, 0, 1, 1], [], []>} : vector<8x128xbf16>, vector<128x128xbf16>, vector<8x128xf32> -> vector<8x128xf32>
    %16 = vector.broadcast %14 : vector<1x128xf32> to vector<8x128xf32>
    %17 = arith.addf %15, %16 : vector<8x128xf32>
    %cst_12 = arith.constant 0.00999999977 : f32
    %18 = vector.broadcast %cst_12 : f32 to vector<8x128xf32>
    %19 = arith.mulf %18, %17 : vector<8x128xf32>
    %20 = arith.maximumf %17, %19 : vector<8x128xf32>
    %21 = arith.truncf %20 : vector<8x128xf32> to vector<8x128xbf16>
    %c2 = arith.constant 2 : index
    %c0_13 = arith.constant 0 : index
    %c0_14 = arith.constant 0 : index
    %22 = vector.load %arg2[%c2, %c0_13, %c0_14] : memref<6x128x128xbf16, #tpu.memory_space<vmem>>, vector<1x128x128xbf16>
    %23 = vector.shape_cast %22 : vector<1x128x128xbf16> to vector<128x128xbf16>
    %c2_15 = arith.constant 2 : index
    %c0_16 = arith.constant 0 : index
    %24 = vector.load %arg3[%c2_15, %c0_16] : memref<8x128xf32, #tpu.memory_space<vmem>>, vector<1x128xf32>
    %cst_17 = arith.constant dense<0.000000e+00> : vector<8x128xf32>
    %25 = tpu.matmul %21, %23, %cst_17 {dimension_numbers = #tpu.dot_dimension_numbers<[1], [0], [0], [1], [0, 0, 1, 1], [], []>} : vector<8x128xbf16>, vector<128x128xbf16>, vector<8x128xf32> -> vector<8x128xf32>
    %26 = vector.broadcast %24 : vector<1x128xf32> to vector<8x128xf32>
    %27 = arith.addf %25, %26 : vector<8x128xf32>
    %cst_18 = arith.constant 0.00999999977 : f32
    %28 = vector.broadcast %cst_18 : f32 to vector<8x128xf32>
    %29 = arith.mulf %28, %27 : vector<8x128xf32>
    %30 = arith.maximumf %27, %29 : vector<8x128xf32>
    %31 = arith.truncf %30 : vector<8x128xf32> to vector<8x128xbf16>
    %c3 = arith.constant 3 : index
    %c0_19 = arith.constant 0 : index
    %c0_20 = arith.constant 0 : index
    %32 = vector.load %arg2[%c3, %c0_19, %c0_20] : memref<6x128x128xbf16, #tpu.memory_space<vmem>>, vector<1x128x128xbf16>
    %33 = vector.shape_cast %32 : vector<1x128x128xbf16> to vector<128x128xbf16>
    %c3_21 = arith.constant 3 : index
    %c0_22 = arith.constant 0 : index
    %34 = vector.load %arg3[%c3_21, %c0_22] : memref<8x128xf32, #tpu.memory_space<vmem>>, vector<1x128xf32>
    %cst_23 = arith.constant dense<0.000000e+00> : vector<8x128xf32>
    %35 = tpu.matmul %31, %33, %cst_23 {dimension_numbers = #tpu.dot_dimension_numbers<[1], [0], [0], [1], [0, 0, 1, 1], [], []>} : vector<8x128xbf16>, vector<128x128xbf16>, vector<8x128xf32> -> vector<8x128xf32>
    %36 = vector.broadcast %34 : vector<1x128xf32> to vector<8x128xf32>
    %37 = arith.addf %35, %36 : vector<8x128xf32>
    %cst_24 = arith.constant 0.00999999977 : f32
    %38 = vector.broadcast %cst_24 : f32 to vector<8x128xf32>
    %39 = arith.mulf %38, %37 : vector<8x128xf32>
    %40 = arith.maximumf %37, %39 : vector<8x128xf32>
    %41 = arith.truncf %40 : vector<8x128xf32> to vector<8x128xbf16>
    %c4 = arith.constant 4 : index
    %c0_25 = arith.constant 0 : index
    %c0_26 = arith.constant 0 : index
    %42 = vector.load %arg2[%c4, %c0_25, %c0_26] : memref<6x128x128xbf16, #tpu.memory_space<vmem>>, vector<1x128x128xbf16>
    %43 = vector.shape_cast %42 : vector<1x128x128xbf16> to vector<128x128xbf16>
    %c4_27 = arith.constant 4 : index
    %c0_28 = arith.constant 0 : index
    %44 = vector.load %arg3[%c4_27, %c0_28] : memref<8x128xf32, #tpu.memory_space<vmem>>, vector<1x128xf32>
    %cst_29 = arith.constant dense<0.000000e+00> : vector<8x128xf32>
    %45 = tpu.matmul %41, %43, %cst_29 {dimension_numbers = #tpu.dot_dimension_numbers<[1], [0], [0], [1], [0, 0, 1, 1], [], []>} : vector<8x128xbf16>, vector<128x128xbf16>, vector<8x128xf32> -> vector<8x128xf32>
    %46 = vector.broadcast %44 : vector<1x128xf32> to vector<8x128xf32>
    %47 = arith.addf %45, %46 : vector<8x128xf32>
    %cst_30 = arith.constant 0.00999999977 : f32
    %48 = vector.broadcast %cst_30 : f32 to vector<8x128xf32>
    %49 = arith.mulf %48, %47 : vector<8x128xf32>
    %50 = arith.maximumf %47, %49 : vector<8x128xf32>
    %51 = arith.truncf %50 : vector<8x128xf32> to vector<8x128xbf16>
    %c5 = arith.constant 5 : index
    %c0_31 = arith.constant 0 : index
    %c0_32 = arith.constant 0 : index
    %52 = vector.load %arg2[%c5, %c0_31, %c0_32] : memref<6x128x128xbf16, #tpu.memory_space<vmem>>, vector<1x128x128xbf16>
    %53 = vector.shape_cast %52 : vector<1x128x128xbf16> to vector<128x128xbf16>
    %c5_33 = arith.constant 5 : index
    %c0_34 = arith.constant 0 : index
    %54 = vector.load %arg3[%c5_33, %c0_34] : memref<8x128xf32, #tpu.memory_space<vmem>>, vector<1x128xf32>
    %cst_35 = arith.constant dense<0.000000e+00> : vector<8x128xf32>
    %55 = tpu.matmul %51, %53, %cst_35 {dimension_numbers = #tpu.dot_dimension_numbers<[1], [0], [0], [1], [0, 0, 1, 1], [], []>} : vector<8x128xbf16>, vector<128x128xbf16>, vector<8x128xf32> -> vector<8x128xf32>
    %56 = vector.broadcast %54 : vector<1x128xf32> to vector<8x128xf32>
    %57 = arith.addf %55, %56 : vector<8x128xf32>
    %c96_i32 = arith.constant 96 : i32
    %58 = tpu.dynamic_rotate %30 by %c96_i32 dim 1 : vector<8x128xf32>, i32 -> vector<8x128xf32>
    %59 = arith.addf %57, %58 : vector<8x128xf32>
    %60 = arith.truncf %59 : vector<8x128xf32> to vector<8x128xbf16>
    %c0_36 = arith.constant 0 : index
    %c0_37 = arith.constant 0 : index
    %61 = vector.load %arg4[%c0_36, %c0_37] : memref<8x128xbf16, #tpu.memory_space<vmem>>, vector<8x128xbf16>
    tpu.vector_store %arg4[%c0_36, %c0_37], %60 {strides = array<i32>} : memref<8x128xbf16, #tpu.memory_space<vmem>>, vector<8x128xbf16>,
    return
  }
  func.func @transform_0(%arg0: i32) -> (i32, i32) {
    %c0_i32 = arith.constant 0 : i32
    %c0_i32_0 = arith.constant 0 : i32
    return %arg0, %c0_i32 : i32, i32
  }
  func.func @transform_1(%arg0: i32) -> (i32, i32, i32) {
    %c0_i32 = arith.constant 0 : i32
    %c0_i32_0 = arith.constant 0 : i32
    %c0_i32_1 = arith.constant 0 : i32
    %c0_i32_2 = arith.constant 0 : i32
    return %c0_i32, %c0_i32_0, %c0_i32_1 : i32, i32, i32
  }
  func.func @transform_2(%arg0: i32) -> (i32, i32) {
    %c0_i32 = arith.constant 0 : i32
    %c0_i32_0 = arith.constant 0 : i32
    %c0_i32_1 = arith.constant 0 : i32
    return %c0_i32, %c0_i32_0 : i32, i32
  }
  func.func @transform_3(%arg0: i32) -> (i32, i32) {
    %c0_i32 = arith.constant 0 : i32
    %c0_i32_0 = arith.constant 0 : i32
    return %arg0, %c0_i32 : i32, i32
  }
}

</mosaic_0001>

<llo_original>
// kernel: ae_forward.1
$region0: #{ae_forward.1}
  #allocation0 [shape = 'u32[]', space=smem, size = 0x4, offset = 0x4, fixed_abs, tag = 'smem constant byte address 0x4 - core index']
  #allocation1 [shape = 'u32[144,128]{1,0:T(1,128)}', space=vmem, size = 0x12000, scoped, tag = 'internal scratch']
  %s0 = inlined_call_operand.hbm [shape: f32[16,84], index: 0, kind: input, shape index: {}]
  %s1 = inlined_call_operand.hbm [shape: bf16[6,128,128], index: 1, kind: input, shape index: {}]
  %s2 = inlined_call_operand.hbm [shape: f32[8,128], index: 2, kind: input, shape index: {}]
  %s3 = inlined_call_operand.vmem [shape: bf16[16,128], index: 3, kind: output, shape index: {}]
  %s4 = sld [smem:[#allocation0]]
  $region57: #{ae_forward.1} parent=0
    _
  %s6 = ssub.s32 1, %s4
  %s7 = scalar_select 0, %s6, %s4
  $region1: #{ae_forward.1} parent=0
    #allocation2 [shape = 'u8[8192]{0}', space=vmem, size = 0x2000, scoped, tag = 'input window, operand 0']
    #allocation3 [shape = 's32[2]{0}', space=sflag, size = 0x8, scoped, tag = 'scoped memory for ae_forward.1']
    #allocation4 [shape = 'u8[196608]{0}', space=vmem, size = 0x30000, scoped, tag = 'input window, operand 1, single buffered']
    #allocation5 [shape = 's32[1]{0}', space=sflag, size = 0x4, scoped, tag = 'scoped memory for ae_forward.1']
    #allocation6 [shape = 'u8[4096]{0}', space=vmem, size = 0x1000, scoped, tag = 'input window, operand 2, single buffered']
    %8 = vsyncpa [#allocation3], 0
    %s9 = scalar_lea.sflag [#allocation3], 1
    %10 = vsyncpa %s9, 0
    %11 = vsyncpa [#allocation5], 0
    loop: start=0, step=1, limit=4
    $region2: #{ae_forward.1} parent=1 // loop_pre_header
      _
    $region3: #{ae_forward.1} parent=1 // loop_header
      %s13 = sphi 0, %s17
      %p14 = scmp.ge.s32.totalorder %s13, 4
      %s23 = sphi 0, %s25
      %s26 = sphi 0, %s23
      %s27 = sphi 0, %s26
      %s43 = sphi 0, %s27
      %s47 = sphi 0, %s47
      %s49 = sphi 0, %s47
      %s50 = sphi 0, %s49
      %s64 = sphi 0, %s50
      %s68 = sphi 0, %s68
      %s70 = sphi 0, %s68
      %s71 = sphi 0, %s70
      %s85 = sphi 0, %s71
      %s91 = sphi 0, %s93
      %s94 = sphi 0, %s91
      %s95 = sphi 0, %s94
      %s111 = sphi 0, %s95
    $region4: #{ae_forward.1} parent=1 // loop_header_branch
      %16 = sbr.rel (%p14) target = $region8
    $region5: #{ae_forward.1} parent=1 // loop_body
      %s18 = ssub.s32 %s13, 1
      %s19 = ssub.s32 %s13, 2
      %s20 = sadd.s32 %s13, 1
      %s21 = ssub.s32 %s13, %s20
      %p22 = scmp.eq.s32.totalorder %s21, 0
      %s24 = sadd.s32 %s23, 1
      %s25 = scalar_select %p22, %s23, %s24
      %p28 = pneg %p22
      %p29 = scmp.eq.s32.totalorder %s13, 1
      %p30 = por %p28, %p29
      %p31 = scmp.ne.s32.totalorder %s23, %s26
      %p32 = scmp.eq.s32.totalorder %s13, 0
      %p33 = por %p31, %p32
      %p34 = scmp.ne.s32.totalorder %s23, %s26
      %p35 = scmp.eq.s32.totalorder %s18, 1
      %p36 = por %p34, %p35
      %p37 = scmp.ne.s32.totalorder %s26, %s27
      %p38 = scmp.eq.s32.totalorder %s18, 0
      %p39 = por %p37, %p38
      %p40 = scmp.ne.s32.totalorder %s26, %s27
      %p41 = scmp.eq.s32.totalorder %s19, 1
      %p42 = por %p40, %p41
      %p44 = scmp.ne.s32.totalorder %s27, %s43
      %p45 = scmp.eq.s32.totalorder %s19, 0
      %p46 = por %p44, %p45
      %s48 = sadd.s32 %s47, 1
      %p51 = scmp.eq.s32.totalorder %s13, 1
      %p52 = scmp.ne.s32.totalorder %s47, %s49
      %p53 = scmp.eq.s32.totalorder %s13, 0
      %p54 = por %p52, %p53
      %p55 = scmp.ne.s32.totalorder %s47, %s49
      %p56 = scmp.eq.s32.totalorder %s18, 1
      %p57 = por %p55, %p56
      %p58 = scmp.ne.s32.totalorder %s49, %s50
      %p59 = scmp.eq.s32.totalorder %s18, 0
      %p60 = por %p58, %p59
      %p61 = scmp.ne.s32.totalorder %s49, %s50
      %p62 = scmp.eq.s32.totalorder %s19, 1
      %p63 = por %p61, %p62
      %p65 = scmp.ne.s32.totalorder %s50, %s64
      %p66 = scmp.eq.s32.totalorder %s19, 0
      %p67 = por %p65, %p66
      %s69 = sadd.s32 %s68, 1
      %p72 = scmp.eq.s32.totalorder %s13, 1
      %p73 = scmp.ne.s32.totalorder %s68, %s70
      %p74 = scmp.eq.s32.totalorder %s13, 0
      %p75 = por %p73, %p74
      %p76 = scmp.ne.s32.totalorder %s68, %s70
      %p77 = scmp.eq.s32.totalorder %s18, 1
      %p78 = por %p76, %p77
      %p79 = scmp.ne.s32.totalorder %s70, %s71
      %p80 = scmp.eq.s32.totalorder %s18, 0
      %p81 = por %p79, %p80
      %p82 = scmp.ne.s32.totalorder %s70, %s71
      %p83 = scmp.eq.s32.totalorder %s19, 1
      %p84 = por %p82, %p83
      %p86 = scmp.ne.s32.totalorder %s71, %s85
      %p87 = scmp.eq.s32.totalorder %s19, 0
      %p88 = por %p86, %p87
      %s89 = ssub.s32 %s13, %s20
      %p90 = scmp.eq.s32.totalorder %s89, 0
      %s92 = sadd.s32 %s91, 1
      %s93 = scalar_select %p90, %s91, %s92
      %p96 = pneg %p90
      %p97 = scmp.eq.s32.totalorder %s13, 1
      %p98 = por %p96, %p97
      %p99 = scmp.ne.s32.totalorder %s91, %s94
      %p100 = scmp.eq.s32.totalorder %s13, 0
      %p101 = por %p99, %p100
      %p102 = scmp.ne.s32.totalorder %s91, %s94
      %p103 = scmp.eq.s32.totalorder %s18, 1
      %p104 = por %p102, %p103
      %p105 = scmp.ne.s32.totalorder %s94, %s95
      %p106 = scmp.eq.s32.totalorder %s18, 0
      %p107 = por %p105, %p106
      %p108 = scmp.ne.s32.totalorder %s94, %s95
      %p109 = scmp.eq.s32.totalorder %s19, 1
      %p110 = por %p108, %p109
      %p112 = scmp.ne.s32.totalorder %s95, %s111
      %p113 = scmp.eq.s32.totalorder %s19, 0
      %p114 = por %p112, %p113
      %p115 = scmp.le.s32.totalorder 1, %s13
      %p116 = scmp.lt.s32.totalorder %s13, 3
      %p117 = pnand %p115, %p116
      %p118 = pneg %p117
      // Predicated region
      $region9: #{ae_forward.1} parent=5 // pred_check
        _
      $region10: #{ae_forward.1} parent=5 // pred_check_branch
        %120 = sbr.rel (%p117) target = $region12
      $region11: #{ae_forward.1} parent=5 // pred_region
        %s121 = ssub.s32 %s13, 1
        // Predicated region
        $region13: #{ae_forward.1} parent=11 // pred_check
          %p122 = pneg %p60
        $region14: #{ae_forward.1} parent=11 // pred_check_branch
          %124 = sbr.rel (%p122) target = $region16
        $region15: #{ae_forward.1} parent=11 // pred_region
          %s126 = ssub.s32 6144, 6144
          %127 = vsyncadd [#allocation5], %s126
          %s128 = sshll.u32 [#allocation4], 4
          %s129 = int_to_ptr.vmem [resolvable:$true] %s128
          %134 = dma.hbm_to_vmem [thread:$0]  %s1, 6144, %s129, [#allocation5], 64, 64, 4
        $region16: #{ae_forward.1} parent=11 // pred_fallthru
          _
        // Predicated region
        $region17: #{ae_forward.1} parent=11 // pred_check
          %p135 = pneg %p81
        $region18: #{ae_forward.1} parent=11 // pred_check_branch
          %137 = sbr.rel (%p135) target = $region20
        $region19: #{ae_forward.1} parent=11 // pred_region
          %s139 = ssub.s32 128, 128
          %140 = vsyncadd [#allocation5], %s139
          %s142 = sshll.u32 [#allocation6], 4
          %s143 = int_to_ptr.vmem [resolvable:$true] %s142
          %145 = dma.hbm_to_vmem [thread:$0]  %s2, 128, %s143, [#allocation5]
        $region20: #{ae_forward.1} parent=11 // pred_fallthru
          _
      $region12: #{ae_forward.1} parent=5 // pred_fallthru
        _
      %p146 = scmp.lt.s32.totalorder %s13, 2
      // Predicated region
      $region21: #{ae_forward.1} parent=5 // pred_check
        %p147 = pneg %p146
      $region22: #{ae_forward.1} parent=5 // pred_check_branch
        %149 = sbr.rel (%p147) target = $region24
      $region23: #{ae_forward.1} parent=5 // pred_region
        // Predicated region
        $region25: #{ae_forward.1} parent=23 // pred_check
          %p150 = pneg %p33
        $region26: #{ae_forward.1} parent=23 // pred_check_branch
          %152 = sbr.rel (%p150) target = $region28
        $region27: #{ae_forward.1} parent=23 // pred_region
          %s153 = sand.u32 %s23, 1
          %s154 = scalar_lea.sflag [#allocation3], %s153
          %s155 = sand.u32 %s23, 1
          %s156 = smul.addr %s155, 8
          %s157 = scalar_lea.vmem [#allocation2], %s156
          %s159 = ssub.s32 128, 128
          %160 = vsyncadd %s154, %s159
          %s161 = smul.addr %s13, 128
          %s162 = scalar_lea.hbm %s0, %s161
          %s164 = sshll.u32 %s157, 4
          %s165 = int_to_ptr.vmem [resolvable:$true] %s164
          %167 = dma.hbm_to_vmem [thread:$0]  %s162, 128, %s165, %s154
        $region28: #{ae_forward.1} parent=23 // pred_fallthru
          _
      $region24: #{ae_forward.1} parent=5 // pred_fallthru
        _
      %p168 = scmp.le.s32.totalorder 1, %s13
      %p169 = scmp.lt.s32.totalorder %s13, 3
      %p170 = pnand %p168, %p169
      %p171 = pneg %p170
      // Predicated region
      $region29: #{ae_forward.1} parent=5 // pred_check
        _
      $region30: #{ae_forward.1} parent=5 // pred_check_branch
        %173 = sbr.rel (%p170) target = $region32
      $region31: #{ae_forward.1} parent=5 // pred_region
        %s174 = ssub.s32 %s13, 1
        %s175 = sand.u32 %s26, 1
        %s176 = scalar_lea.sflag [#allocation3], %s175
        %s177 = sand.u32 %s26, 1
        %s178 = smul.addr %s177, 8
        %s179 = scalar_lea.vmem [#allocation2], %s178
        // Predicated region
        $region33: #{ae_forward.1} parent=31 // pred_check
          %p180 = pneg %p39
        $region34: #{ae_forward.1} parent=31 // pred_check_branch
          %182 = sbr.rel (%p180) target = $region36
        $region35: #{ae_forward.1} parent=31 // pred_region
          %183 = dma.done %s176, 128
        $region36: #{ae_forward.1} parent=31 // pred_fallthru
          _
        // Predicated region
        $region37: #{ae_forward.1} parent=31 // pred_check
          %p184 = pneg %p60
        $region38: #{ae_forward.1} parent=31 // pred_check_branch
          %186 = sbr.rel (%p184) target = $region40
        $region39: #{ae_forward.1} parent=31 // pred_region
          %187 = dma.done [#allocation5], 6144
        $region40: #{ae_forward.1} parent=31 // pred_fallthru
          _
        // Predicated region
        $region41: #{ae_forward.1} parent=31 // pred_check
          %p188 = pneg %p81
        $region42: #{ae_forward.1} parent=31 // pred_check_branch
          %190 = sbr.rel (%p188) target = $region44
        $region43: #{ae_forward.1} parent=31 // pred_region
          %191 = dma.done [#allocation5], 128
        $region44: #{ae_forward.1} parent=31 // pred_fallthru
          _
        %s192 = sand.u32 %s26, 1
        %s193 = scalar_lea.sflag [#allocation3], %s192
        %s194 = sand.u32 %s26, 1
        %s195 = smul.addr %s194, 8
        %s196 = scalar_lea.vmem [#allocation2], %s195
        %p197 = pneg %p39
        %p198 = pneg %p36
        %p199 = pneg %p60
        %p200 = pneg %p57
        %p201 = pneg %p81
        %p202 = pneg %p78
        %p203 = pneg %p107
        %p204 = pneg %p104
        %p205 = scmp.lt.s32.totalorder %s18, 1
        %s206 = scalar_select %p205, %s18, 1
        %s207 = smul.addr %s206, 4
        %s208 = scalar_lea.vmem %s3, %s207
        %p209 = scmp.lt.s32.totalorder %s18, 1
        %s210 = scalar_select %p209, %s18, 1
        %s211 = smul.addr %s210, 4
        %s212 = scalar_lea.vmem %s3, %s211
        %v214 = vld [vmem:[%s179] sm:$0xff]
        %v215 = vpack.c.bf16 %v214, %v214
        %v216 = vld [vmem:[#allocation4] sm:$0xf]
        %v217 = vld [vmem:[#allocation4 + $0x4] sm:$0xf]
        %v218 = vld [vmem:[#allocation4 + $0x8] sm:$0xf]
        %v219 = vld [vmem:[#allocation4 + $0xc] sm:$0xf]
        %v220 = vld [vmem:[#allocation4 + $0x10] sm:$0xf]
        %v221 = vld [vmem:[#allocation4 + $0x14] sm:$0xf]
        %v222 = vld [vmem:[#allocation4 + $0x18] sm:$0xf]
        %v223 = vld [vmem:[#allocation4 + $0x1c] sm:$0xf]
        %v224 = vld [vmem:[#allocation4 + $0x20] sm:$0xf]
        %v225 = vld [vmem:[#allocation4 + $0x24] sm:$0xf]
        %v226 = vld [vmem:[#allocation4 + $0x28] sm:$0x3]
        %v227 = vld [vmem:[#allocation6] sm:$0x1]
        %v228 = vlaneseq
        %v229 = vshrl.u32 %v228, 7
        %v230 = vsub.s32 0, %v229
        %v231 = vrot.slane %v227, %v230
        %v243 = vunpack.c.l.b16 %v216
        %v244 = vunpack.c.l.b16 %v217
        %v245 = vunpack.c.l.b16 %v218
        %v246 = vunpack.c.l.b16 %v219
        %v247 = vunpack.c.l.b16 %v220
        %v248 = vunpack.c.l.b16 %v221
        %v249 = vunpack.c.l.b16 %v222
        %v250 = vunpack.c.l.b16 %v223
        %v251 = vunpack.c.l.b16 %v224
        %v252 = vunpack.c.l.b16 %v225
        %v253 = vunpack.c.l.b16 %v226
        %v254 = vpack.c.b16 %v244, %v243
        %v255 = vpack.c.b16 %v246, %v245
        %v256 = vpack.c.b16 %v248, %v247
        %v257 = vpack.c.b16 %v250, %v249
        %v258 = vpack.c.b16 %v252, %v251
        %v259 = vpack.c.b16 %v253, %v253
        %vm265 = vcmask 687104
        %v267 = vsel %vm265, %v215, 0
        %vm269 = vcmask 1041408
        %v271 = vsel %vm269, %v259, 0
        %273 = vmatprep.subr.bf16.mxu0 0
        %274 = vmatpush1.bf16.msra.mxu0 0
        %275 = vmatprep.subr.bf16.mxu0 0
        %276 = vmatpush1.bf16.msra.mxu0 0
        %277 = vmatprep.subr.bf16.mxu0 0
        %278 = vmatpush1.bf16.msra.mxu0 %v271
        %279 = vmatprep.subr.bf16.mxu0 0
        %280 = vmatpush1.bf16.msra.mxu0 %v258
        %281 = vmatprep.subr.bf16.mxu0 0
        %282 = vmatpush1.bf16.msra.mxu0 %v257
        %283 = vmatprep.subr.bf16.mxu0 0
        %284 = vmatpush1.bf16.msra.mxu0 %v256
        %285 = vmatprep.subr.bf16.mxu0 0
        %286 = vmatpush1.bf16.msra.mxu0 %v255
        %287 = vmatprep.subr.bf16.mxu0 0
        %288 = vmatpush1.bf16.msra.mxu0 %v254
        %289 = vmatprep.subr.bf16.mxu0 0
        %290 = vmatpush2.bf16.msra.mxu0 0
        %291 = vmatprep.subr.bf16.mxu0 0
        %292 = vmatpush2.bf16.msra.mxu0 0
        %293 = vmatprep.subr.bf16.mxu0 0
        %294 = vmatpush2.bf16.msra.mxu0 0
        %295 = vmatprep.subr.bf16.mxu0 0
        %296 = vmatpush2.bf16.msra.mxu0 0
        %297 = vmatprep.subr.bf16.mxu0 0
        %298 = vmatpush2.bf16.msra.mxu0 0
        %299 = vmatprep.subr.bf16.mxu0 0
        %300 = vmatpush2.bf16.msra.mxu0 0
        %301 = vmatprep.subr.bf16.mxu0 0
        %302 = vmatpush2.bf16.msra.mxu0 0
        %303 = vmatprep.subr.bf16.mxu0 0
        %304 = vmatpush2.bf16.msra.mxu0 0
        %305 = vmatprep.mubr.bf16.mxu0 0
        %306 = vmatmul.mubr.bf16.gmra.mxu0 %v267
        %v307 = vpop.f32.mrf.mxu0
        %v308 = vadd.f32 %v231, %v307
        %v309 = vpop.f32.mrf.mxu0
        %v310 = vpop.f32.mrf.mxu0
        %v311 = vpop.f32.mrf.mxu0
        %312 = vdwg.mxu0
        %v313 = vmul.f32 %v308, 0.01
        %v314 = vmax.f32 %v308, %v313
        %v315 = vpack.c.bf16 %v314, %v314
        %s316 = scalar_lea.vmem [#allocation4], 64
        %v317 = vld [vmem:[%s316] sm:$0xf]
        %v318 = vld [vmem:[%s316 + $0x4] sm:$0xf]
        %v319 = vld [vmem:[%s316 + $0x8] sm:$0xf]
        %v320 = vld [vmem:[%s316 + $0xc] sm:$0xf]
        %v321 = vld [vmem:[%s316 + $0x10] sm:$0xf]
        %v322 = vld [vmem:[%s316 + $0x14] sm:$0xf]
        %v323 = vld [vmem:[%s316 + $0x18] sm:$0xf]
        %v324 = vld [vmem:[%s316 + $0x1c] sm:$0xf]
        %v325 = vld [vmem:[%s316 + $0x20] sm:$0xf]
        %v326 = vld [vmem:[%s316 + $0x24] sm:$0xf]
        %v327 = vld [vmem:[%s316 + $0x28] sm:$0xf]
        %v328 = vld [vmem:[%s316 + $0x2c] sm:$0xf]
        %v329 = vld [vmem:[%s316 + $0x30] sm:$0xf]
        %v330 = vld [vmem:[%s316 + $0x34] sm:$0xf]
        %v331 = vld [vmem:[%s316 + $0x38] sm:$0xf]
        %v332 = vld [vmem:[%s316 + $0x3c] sm:$0xf]
        %v333 = vld [vmem:[#allocation6 + $0x1] sm:$0x1]
        %v334 = vlaneseq
        %v335 = vshrl.u32 %v334, 7
        %v336 = vsub.s32 0, %v335
        %v337 = vrot.slane %v333, %v336
        %v354 = vunpack.c.l.b16 %v317
        %v355 = vunpack.c.l.b16 %v318
        %v356 = vunpack.c.l.b16 %v319
        %v357 = vunpack.c.l.b16 %v320
        %v358 = vunpack.c.l.b16 %v321
        %v359 = vunpack.c.l.b16 %v322
        %v360 = vunpack.c.l.b16 %v323
        %v361 = vunpack.c.l.b16 %v324
        %v362 = vunpack.c.l.b16 %v325
        %v363 = vunpack.c.l.b16 %v326
        %v364 = vunpack.c.l.b16 %v327
        %v365 = vunpack.c.l.b16 %v328
        %v366 = vunpack.c.l.b16 %v329
        %v367 = vunpack.c.l.b16 %v330
        %v368 = vunpack.c.l.b16 %v331
        %v369 = vunpack.c.l.b16 %v332
        %v370 = vpack.c.b16 %v355, %v354
        %v371 = vpack.c.b16 %v357, %v356
        %v372 = vpack.c.b16 %v359, %v358
        %v373 = vpack.c.b16 %v361, %v360
        %v374 = vpack.c.b16 %v363, %v362
        %v375 = vpack.c.b16 %v365, %v364
        %v376 = vpack.c.b16 %v367, %v366
        %v377 = vpack.c.b16 %v369, %v368
        %386 = vmatprep.subr.bf16.mxu0 0
        %387 = vmatpush1.bf16.msra.mxu0 %v377
        %388 = vmatprep.subr.bf16.mxu0 0
        %389 = vmatpush1.bf16.msra.mxu0 %v376
        %390 = vmatprep.subr.bf16.mxu0 0
        %391 = vmatpush1.bf16.msra.mxu0 %v375
        %392 = vmatprep.subr.bf16.mxu0 0
        %393 = vmatpush1.bf16.msra.mxu0 %v374
        %394 = vmatprep.subr.bf16.mxu0 0
        %395 = vmatpush1.bf16.msra.mxu0 %v373
        %396 = vmatprep.subr.bf16.mxu0 0
        %397 = vmatpush1.bf16.msra.mxu0 %v372
        %398 = vmatprep.subr.bf16.mxu0 0
        %399 = vmatpush1.bf16.msra.mxu0 %v371
        %400 = vmatprep.subr.bf16.mxu0 0
        %401 = vmatpush1.bf16.msra.mxu0 %v370
        %402 = vmatprep.subr.bf16.mxu0 0
        %403 = vmatpush2.bf16.msra.mxu0 0
        %404 = vmatprep.subr.bf16.mxu0 0
        %405 = vmatpush2.bf16.msra.mxu0 0
        %406 = vmatprep.subr.bf16.mxu0 0
        %407 = vmatpush2.bf16.msra.mxu0 0
        %408 = vmatprep.subr.bf16.mxu0 0
        %409 = vmatpush2.bf16.msra.mxu0 0
        %410 = vmatprep.subr.bf16.mxu0 0
        %411 = vmatpush2.bf16.msra.mxu0 0
        %412 = vmatprep.subr.bf16.mxu0 0
        %413 = vmatpush2.bf16.msra.mxu0 0
        %414 = vmatprep.subr.bf16.mxu0 0
        %415 = vmatpush2.bf16.msra.mxu0 0
        %416 = vmatprep.subr.bf16.mxu0 0
        %417 = vmatpush2.bf16.msra.mxu0 0
        %418 = vmatprep.mubr.bf16.mxu0 0
        %419 = vmatmul.mubr.bf16.gmra.mxu0 %v315
        %v420 = vpop.f32.mrf.mxu0
        %v421 = vadd.f32 %v337, %v420
        %v422 = vpop.f32.mrf.mxu0
        %v423 = vpop.f32.mrf.mxu0
        %v424 = vpop.f32.mrf.mxu0
        %425 = vdwg.mxu0
        %v426 = vmul.f32 %v421, 0.01
        %v427 = vmax.f32 %v421, %v426
        %v428 = vpack.c.bf16 %v427, %v427
        %s429 = scalar_lea.vmem [#allocation4], 128
        %v430 = vld [vmem:[%s429] sm:$0xf]
        %v431 = vld [vmem:[%s429 + $0x4] sm:$0xf]
        %v432 = vld [vmem:[%s429 + $0x8] sm:$0xf]
        %v433 = vld [vmem:[%s429 + $0xc] sm:$0xf]
        %v434 = vld [vmem:[%s429 + $0x10] sm:$0xf]
        %v435 = vld [vmem:[%s429 + $0x14] sm:$0xf]
        %v436 = vld [vmem:[%s429 + $0x18] sm:$0xf]
        %v437 = vld [vmem:[%s429 + $0x1c] sm:$0xf]
        %v438 = vld [vmem:[%s429 + $0x20] sm:$0xf]
        %v439 = vld [vmem:[%s429 + $0x24] sm:$0xf]
        %v440 = vld [vmem:[%s429 + $0x28] sm:$0xf]
        %v441 = vld [vmem:[%s429 + $0x2c] sm:$0xf]
        %v442 = vld [vmem:[%s429 + $0x30] sm:$0xf]
        %v443 = vld [vmem:[%s429 + $0x34] sm:$0xf]
        %v444 = vld [vmem:[%s429 + $0x38] sm:$0xf]
        %v445 = vld [vmem:[%s429 + $0x3c] sm:$0xf]
        %v446 = vld [vmem:[#allocation6 + $0x2] sm:$0x1]
        %v447 = vlaneseq
        %v448 = vshrl.u32 %v447, 7
        %v449 = vsub.s32 0, %v448
        %v450 = vrot.slane %v446, %v449
        %v467 = vunpack.c.l.b16 %v430
        %v468 = vunpack.c.l.b16 %v431
        %v469 = vunpack.c.l.b16 %v432
        %v470 = vunpack.c.l.b16 %v433
        %v471 = vunpack.c.l.b16 %v434
        %v472 = vunpack.c.l.b16 %v435
        %v473 = vunpack.c.l.b16 %v436
        %v474 = vunpack.c.l.b16 %v437
        %v475 = vunpack.c.l.b16 %v438
        %v476 = vunpack.c.l.b16 %v439
        %v477 = vunpack.c.l.b16 %v440
        %v478 = vunpack.c.l.b16 %v441
        %v479 = vunpack.c.l.b16 %v442
        %v480 = vunpack.c.l.b16 %v443
        %v481 = vunpack.c.l.b16 %v444
        %v482 = vunpack.c.l.b16 %v445
        %v483 = vpack.c.b16 %v468, %v467
        %v484 = vpack.c.b16 %v470, %v469
        %v485 = vpack.c.b16 %v472, %v471
        %v486 = vpack.c.b16 %v474, %v473
        %v487 = vpack.c.b16 %v476, %v475
        %v488 = vpack.c.b16 %v478, %v477
        %v489 = vpack.c.b16 %v480, %v479
        %v490 = vpack.c.b16 %v482, %v481
        %499 = vmatprep.subr.bf16.mxu0 0
        %500 = vmatpush1.bf16.msra.mxu0 %v490
        %501 = vmatprep.subr.bf16.mxu0 0
        %502 = vmatpush1.bf16.msra.mxu0 %v489
        %503 = vmatprep.subr.bf16.mxu0 0
        %504 = vmatpush1.bf16.msra.mxu0 %v488
        %505 = vmatprep.subr.bf16.mxu0 0
        %506 = vmatpush1.bf16.msra.mxu0 %v487
        %507 = vmatprep.subr.bf16.mxu0 0
        %508 = vmatpush1.bf16.msra.mxu0 %v486
        %509 = vmatprep.subr.bf16.mxu0 0
        %510 = vmatpush1.bf16.msra.mxu0 %v485
        %511 = vmatprep.subr.bf16.mxu0 0
        %512 = vmatpush1.bf16.msra.mxu0 %v484
        %513 = vmatprep.subr.bf16.mxu0 0
        %514 = vmatpush1.bf16.msra.mxu0 %v483
        %515 = vmatprep.subr.bf16.mxu0 0
        %516 = vmatpush2.bf16.msra.mxu0 0
        %517 = vmatprep.subr.bf16.mxu0 0
        %518 = vmatpush2.bf16.msra.mxu0 0
        %519 = vmatprep.subr.bf16.mxu0 0
        %520 = vmatpush2.bf16.msra.mxu0 0
        %521 = vmatprep.subr.bf16.mxu0 0
        %522 = vmatpush2.bf16.msra.mxu0 0
        %523 = vmatprep.subr.bf16.mxu0 0
        %524 = vmatpush2.bf16.msra.mxu0 0
        %525 = vmatprep.subr.bf16.mxu0 0
        %526 = vmatpush2.bf16.msra.mxu0 0
        %527 = vmatprep.subr.bf16.mxu0 0
        %528 = vmatpush2.bf16.msra.mxu0 0
        %529 = vmatprep.subr.bf16.mxu0 0
        %530 = vmatpush2.bf16.msra.mxu0 0
        %531 = vmatprep.mubr.bf16.mxu0 0
        %532 = vmatmul.mubr.bf16.gmra.mxu0 %v428
        %v533 = vpop.f32.mrf.mxu0
        %v534 = vadd.f32 %v450, %v533
        %v535 = vpop.f32.mrf.mxu0
        %v536 = vpop.f32.mrf.mxu0
        %v537 = vpop.f32.mrf.mxu0
        %538 = vdwg.mxu0
        %v539 = vmul.f32 %v534, 0.01
        %v540 = vmax.f32 %v534, %v539
        %v541 = vpack.c.bf16 %v540, %v540
        %s542 = scalar_lea.vmem [#allocation4], 192
        %v543 = vld [vmem:[%s542] sm:$0xf]
        %v544 = vld [vmem:[%s542 + $0x4] sm:$0xf]
        %v545 = vld [vmem:[%s542 + $0x8] sm:$0xf]
        %v546 = vld [vmem:[%s542 + $0xc] sm:$0xf]
        %v547 = vld [vmem:[%s542 + $0x10] sm:$0xf]
        %v548 = vld [vmem:[%s542 + $0x14] sm:$0xf]
        %v549 = vld [vmem:[%s542 + $0x18] sm:$0xf]
        %v550 = vld [vmem:[%s542 + $0x1c] sm:$0xf]
        %v551 = vld [vmem:[%s542 + $0x20] sm:$0xf]
        %v552 = vld [vmem:[%s542 + $0x24] sm:$0xf]
        %v553 = vld [vmem:[%s542 + $0x28] sm:$0xf]
        %v554 = vld [vmem:[%s542 + $0x2c] sm:$0xf]
        %v555 = vld [vmem:[%s542 + $0x30] sm:$0xf]
        %v556 = vld [vmem:[%s542 + $0x34] sm:$0xf]
        %v557 = vld [vmem:[%s542 + $0x38] sm:$0xf]
        %v558 = vld [vmem:[%s542 + $0x3c] sm:$0xf]
        %v559 = vld [vmem:[#allocation6 + $0x3] sm:$0x1]
        %v560 = vlaneseq
        %v561 = vshrl.u32 %v560, 7
        %v562 = vsub.s32 0, %v561
        %v563 = vrot.slane %v559, %v562
        %v580 = vunpack.c.l.b16 %v543
        %v581 = vunpack.c.l.b16 %v544
        %v582 = vunpack.c.l.b16 %v545
        %v583 = vunpack.c.l.b16 %v546
        %v584 = vunpack.c.l.b16 %v547
        %v585 = vunpack.c.l.b16 %v548
        %v586 = vunpack.c.l.b16 %v549
        %v587 = vunpack.c.l.b16 %v550
        %v588 = vunpack.c.l.b16 %v551
        %v589 = vunpack.c.l.b16 %v552
        %v590 = vunpack.c.l.b16 %v553
        %v591 = vunpack.c.l.b16 %v554
        %v592 = vunpack.c.l.b16 %v555
        %v593 = vunpack.c.l.b16 %v556
        %v594 = vunpack.c.l.b16 %v557
        %v595 = vunpack.c.l.b16 %v558
        %v596 = vpack.c.b16 %v581, %v580
        %v597 = vpack.c.b16 %v583, %v582
        %v598 = vpack.c.b16 %v585, %v584
        %v599 = vpack.c.b16 %v587, %v586
        %v600 = vpack.c.b16 %v589, %v588
        %v601 = vpack.c.b16 %v591, %v590
        %v602 = vpack.c.b16 %v593, %v592
        %v603 = vpack.c.b16 %v595, %v594
        %612 = vmatprep.subr.bf16.mxu0 0
        %613 = vmatpush1.bf16.msra.mxu0 %v603
        %614 = vmatprep.subr.bf16.mxu0 0
        %615 = vmatpush1.bf16.msra.mxu0 %v602
        %616 = vmatprep.subr.bf16.mxu0 0
        %617 = vmatpush1.bf16.msra.mxu0 %v601
        %618 = vmatprep.subr.bf16.mxu0 0
        %619 = vmatpush1.bf16.msra.mxu0 %v600
        %620 = vmatprep.subr.bf16.mxu0 0
        %621 = vmatpush1.bf16.msra.mxu0 %v599
        %622 = vmatprep.subr.bf16.mxu0 0
        %623 = vmatpush1.bf16.msra.mxu0 %v598
        %624 = vmatprep.subr.bf16.mxu0 0
        %625 = vmatpush1.bf16.msra.mxu0 %v597
        %626 = vmatprep.subr.bf16.mxu0 0
        %627 = vmatpush1.bf16.msra.mxu0 %v596
        %628 = vmatprep.subr.bf16.mxu0 0
        %629 = vmatpush2.bf16.msra.mxu0 0
        %630 = vmatprep.subr.bf16.mxu0 0
        %631 = vmatpush2.bf16.msra.mxu0 0
        %632 = vmatprep.subr.bf16.mxu0 0
        %633 = vmatpush2.bf16.msra.mxu0 0
        %634 = vmatprep.subr.bf16.mxu0 0
        %635 = vmatpush2.bf16.msra.mxu0 0
        %636 = vmatprep.subr.bf16.mxu0 0
        %637 = vmatpush2.bf16.msra.mxu0 0
        %638 = vmatprep.subr.bf16.mxu0 0
        %639 = vmatpush2.bf16.msra.mxu0 0
        %640 = vmatprep.subr.bf16.mxu0 0
        %641 = vmatpush2.bf16.msra.mxu0 0
        %642 = vmatprep.subr.bf16.mxu0 0
        %643 = vmatpush2.bf16.msra.mxu0 0
        %644 = vmatprep.mubr.bf16.mxu0 0
        %645 = vmatmul.mubr.bf16.gmra.mxu0 %v541
        %v646 = vpop.f32.mrf.mxu0
        %v647 = vadd.f32 %v563, %v646
        %v648 = vpop.f32.mrf.mxu0
        %v649 = vpop.f32.mrf.mxu0
        %v650 = vpop.f32.mrf.mxu0
        %651 = vdwg.mxu0
        %v652 = vmul.f32 %v647, 0.01
        %v653 = vmax.f32 %v647, %v652
        %v654 = vpack.c.bf16 %v653, %v653
        %s655 = scalar_lea.vmem [#allocation4], 256
        %v656 = vld [vmem:[%s655] sm:$0xf]
        %v657 = vld [vmem:[%s655 + $0x4] sm:$0xf]
        %v658 = vld [vmem:[%s655 + $0x8] sm:$0xf]
        %v659 = vld [vmem:[%s655 + $0xc] sm:$0xf]
        %v660 = vld [vmem:[%s655 + $0x10] sm:$0xf]
        %v661 = vld [vmem:[%s655 + $0x14] sm:$0xf]
        %v662 = vld [vmem:[%s655 + $0x18] sm:$0xf]
        %v663 = vld [vmem:[%s655 + $0x1c] sm:$0xf]
        %v664 = vld [vmem:[%s655 + $0x20] sm:$0xf]
        %v665 = vld [vmem:[%s655 + $0x24] sm:$0xf]
        %v666 = vld [vmem:[%s655 + $0x28] sm:$0xf]
        %v667 = vld [vmem:[%s655 + $0x2c] sm:$0xf]
        %v668 = vld [vmem:[%s655 + $0x30] sm:$0xf]
        %v669 = vld [vmem:[%s655 + $0x34] sm:$0xf]
        %v670 = vld [vmem:[%s655 + $0x38] sm:$0xf]
        %v671 = vld [vmem:[%s655 + $0x3c] sm:$0xf]
        %v672 = vld [vmem:[#allocation6 + $0x4] sm:$0x1]
        %v673 = vlaneseq
        %v674 = vshrl.u32 %v673, 7
        %v675 = vsub.s32 0, %v674
        %v676 = vrot.slane %v672, %v675
        %v693 = vunpack.c.l.b16 %v656
        %v694 = vunpack.c.l.b16 %v657
        %v695 = vunpack.c.l.b16 %v658
        %v696 = vunpack.c.l.b16 %v659
        %v697 = vunpack.c.l.b16 %v660
        %v698 = vunpack.c.l.b16 %v661
        %v699 = vunpack.c.l.b16 %v662
        %v700 = vunpack.c.l.b16 %v663
        %v701 = vunpack.c.l.b16 %v664
        %v702 = vunpack.c.l.b16 %v665
        %v703 = vunpack.c.l.b16 %v666
        %v704 = vunpack.c.l.b16 %v667
        %v705 = vunpack.c.l.b16 %v668
        %v706 = vunpack.c.l.b16 %v669
        %v707 = vunpack.c.l.b16 %v670
        %v708 = vunpack.c.l.b16 %v671
        %v709 = vpack.c.b16 %v694, %v693
        %v710 = vpack.c.b16 %v696, %v695
        %v711 = vpack.c.b16 %v698, %v697
        %v712 = vpack.c.b16 %v700, %v699
        %v713 = vpack.c.b16 %v702, %v701
        %v714 = vpack.c.b16 %v704, %v703
        %v715 = vpack.c.b16 %v706, %v705
        %v716 = vpack.c.b16 %v708, %v707
        %725 = vmatprep.subr.bf16.mxu0 0
        %726 = vmatpush1.bf16.msra.mxu0 %v716
        %727 = vmatprep.subr.bf16.mxu0 0
        %728 = vmatpush1.bf16.msra.mxu0 %v715
        %729 = vmatprep.subr.bf16.mxu0 0
        %730 = vmatpush1.bf16.msra.mxu0 %v714
        %731 = vmatprep.subr.bf16.mxu0 0
        %732 = vmatpush1.bf16.msra.mxu0 %v713
        %733 = vmatprep.subr.bf16.mxu0 0
        %734 = vmatpush1.bf16.msra.mxu0 %v712
        %735 = vmatprep.subr.bf16.mxu0 0
        %736 = vmatpush1.bf16.msra.mxu0 %v711
        %737 = vmatprep.subr.bf16.mxu0 0
        %738 = vmatpush1.bf16.msra.mxu0 %v710
        %739 = vmatprep.subr.bf16.mxu0 0
        %740 = vmatpush1.bf16.msra.mxu0 %v709
        %741 = vmatprep.subr.bf16.mxu0 0
        %742 = vmatpush2.bf16.msra.mxu0 0
        %743 = vmatprep.subr.bf16.mxu0 0
        %744 = vmatpush2.bf16.msra.mxu0 0
        %745 = vmatprep.subr.bf16.mxu0 0
        %746 = vmatpush2.bf16.msra.mxu0 0
        %747 = vmatprep.subr.bf16.mxu0 0
        %748 = vmatpush2.bf16.msra.mxu0 0
        %749 = vmatprep.subr.bf16.mxu0 0
        %750 = vmatpush2.bf16.msra.mxu0 0
        %751 = vmatprep.subr.bf16.mxu0 0
        %752 = vmatpush2.bf16.msra.mxu0 0
        %753 = vmatprep.subr.bf16.mxu0 0
        %754 = vmatpush2.bf16.msra.mxu0 0
        %755 = vmatprep.subr.bf16.mxu0 0
        %756 = vmatpush2.bf16.msra.mxu0 0
        %757 = vmatprep.mubr.bf16.mxu0 0
        %758 = vmatmul.mubr.bf16.gmra.mxu0 %v654
        %v759 = vpop.f32.mrf.mxu0
        %v760 = vadd.f32 %v676, %v759
        %v761 = vpop.f32.mrf.mxu0
        %v762 = vpop.f32.mrf.mxu0
        %v763 = vpop.f32.mrf.mxu0
        %764 = vdwg.mxu0
        %v765 = vmul.f32 %v760, 0.01
        %v766 = vmax.f32 %v760, %v765
        %v767 = vpack.c.bf16 %v766, %v766
        %s768 = scalar_lea.vmem [#allocation4], 320
        %v769 = vld [vmem:[%s768] sm:$0xf]
        %v770 = vld [vmem:[%s768 + $0x4] sm:$0xf]
        %v771 = vld [vmem:[%s768 + $0x8] sm:$0xf]
        %v772 = vld [vmem:[%s768 + $0xc] sm:$0xf]
        %v773 = vld [vmem:[%s768 + $0x10] sm:$0xf]
        %v774 = vld [vmem:[%s768 + $0x14] sm:$0xf]
        %v775 = vld [vmem:[%s768 + $0x18] sm:$0xf]
        %v776 = vld [vmem:[%s768 + $0x1c] sm:$0xf]
        %v777 = vld [vmem:[%s768 + $0x20] sm:$0xf]
        %v778 = vld [vmem:[%s768 + $0x24] sm:$0xf]
        %v779 = vld [vmem:[%s768 + $0x28] sm:$0xf]
        %v780 = vld [vmem:[%s768 + $0x2c] sm:$0xf]
        %v781 = vld [vmem:[%s768 + $0x30] sm:$0xf]
        %v782 = vld [vmem:[%s768 + $0x34] sm:$0xf]
        %v783 = vld [vmem:[%s768 + $0x38] sm:$0xf]
        %v784 = vld [vmem:[%s768 + $0x3c] sm:$0xf]
        %v785 = vld [vmem:[#allocation6 + $0x5] sm:$0x1]
        %v786 = vlaneseq
        %v787 = vshrl.u32 %v786, 7
        %v788 = vsub.s32 0, %v787
        %v789 = vrot.slane %v785, %v788
        %v806 = vunpack.c.l.b16 %v769
        %v807 = vunpack.c.l.b16 %v770
        %v808 = vunpack.c.l.b16 %v771
        %v809 = vunpack.c.l.b16 %v772
        %v810 = vunpack.c.l.b16 %v773
        %v811 = vunpack.c.l.b16 %v774
        %v812 = vunpack.c.l.b16 %v775
        %v813 = vunpack.c.l.b16 %v776
        %v814 = vunpack.c.l.b16 %v777
        %v815 = vunpack.c.l.b16 %v778
        %v816 = vunpack.c.l.b16 %v779
        %v817 = vunpack.c.l.b16 %v780
        %v818 = vunpack.c.l.b16 %v781
        %v819 = vunpack.c.l.b16 %v782
        %v820 = vunpack.c.l.b16 %v783
        %v821 = vunpack.c.l.b16 %v784
        %v822 = vpack.c.b16 %v807, %v806
        %v823 = vpack.c.b16 %v809, %v808
        %v824 = vpack.c.b16 %v811, %v810
        %v825 = vpack.c.b16 %v813, %v812
        %v826 = vpack.c.b16 %v815, %v814
        %v827 = vpack.c.b16 %v817, %v816
        %v828 = vpack.c.b16 %v819, %v818
        %v829 = vpack.c.b16 %v821, %v820
        %838 = vmatprep.subr.bf16.mxu0 0
        %839 = vmatpush1.bf16.msra.mxu0 %v829
        %840 = vmatprep.subr.bf16.mxu0 0
        %841 = vmatpush1.bf16.msra.mxu0 %v828
        %842 = vmatprep.subr.bf16.mxu0 0
        %843 = vmatpush1.bf16.msra.mxu0 %v827
        %844 = vmatprep.subr.bf16.mxu0 0
        %845 = vmatpush1.bf16.msra.mxu0 %v826
        %846 = vmatprep.subr.bf16.mxu0 0
        %847 = vmatpush1.bf16.msra.mxu0 %v825
        %848 = vmatprep.subr.bf16.mxu0 0
        %849 = vmatpush1.bf16.msra.mxu0 %v824
        %850 = vmatprep.subr.bf16.mxu0 0
        %851 = vmatpush1.bf16.msra.mxu0 %v823
        %852 = vmatprep.subr.bf16.mxu0 0
        %853 = vmatpush1.bf16.msra.mxu0 %v822
        %854 = vmatprep.subr.bf16.mxu0 0
        %855 = vmatpush2.bf16.msra.mxu0 0
        %856 = vmatprep.subr.bf16.mxu0 0
        %857 = vmatpush2.bf16.msra.mxu0 0
        %858 = vmatprep.subr.bf16.mxu0 0
        %859 = vmatpush2.bf16.msra.mxu0 0
        %860 = vmatprep.subr.bf16.mxu0 0
        %861 = vmatpush2.bf16.msra.mxu0 0
        %862 = vmatprep.subr.bf16.mxu0 0
        %863 = vmatpush2.bf16.msra.mxu0 0
        %864 = vmatprep.subr.bf16.mxu0 0
        %865 = vmatpush2.bf16.msra.mxu0 0
        %866 = vmatprep.subr.bf16.mxu0 0
        %867 = vmatpush2.bf16.msra.mxu0 0
        %868 = vmatprep.subr.bf16.mxu0 0
        %869 = vmatpush2.bf16.msra.mxu0 0
        %870 = vmatprep.mubr.bf16.mxu0 0
        %871 = vmatmul.mubr.bf16.gmra.mxu0 %v767
        %v872 = vpop.f32.mrf.mxu0
        %v873 = vadd.f32 %v789, %v872
        %v874 = vpop.f32.mrf.mxu0
        %v875 = vpop.f32.mrf.mxu0
        %v876 = vpop.f32.mrf.mxu0
        %877 = vdwg.mxu0
        %878 = vrot.lane.b32.xlu0 %v540, 96
        %v879 = vpop.permute.xlu0 %878
        %v880 = vadd.f32 %v873, %v879
        %v881 = vpack.c.bf16 %v880, %v880
        %882 = vst [vmem:[%s212] sm:$0xf] %v881
        %p883 = scmp.lt.s32.totalorder %s18, 1
        %s884 = scalar_select %p883, %s18, 1
        %s885 = smul.addr %s884, 4
        %s886 = scalar_lea.vmem %s3, %s885
        // Predicated region
        $region45: #{ae_forward.1} parent=31 // pred_check
          %p887 = pneg %p104
        $region46: #{ae_forward.1} parent=31 // pred_check_branch
          %889 = sbr.rel (%p887) target = $region48
        $region47: #{ae_forward.1} parent=31 // pred_region
          _
        $region48: #{ae_forward.1} parent=31 // pred_fallthru
          _
      $region32: #{ae_forward.1} parent=5 // pred_fallthru
        _
      %p890 = scmp.le.s32.totalorder 2, %s13
      // Predicated region
      $region49: #{ae_forward.1} parent=5 // pred_check
        %p891 = pneg %p890
      $region50: #{ae_forward.1} parent=5 // pred_check_branch
        %893 = sbr.rel (%p891) target = $region52
      $region51: #{ae_forward.1} parent=5 // pred_region
        %s894 = ssub.s32 %s13, 2
        // Predicated region
        $region53: #{ae_forward.1} parent=51 // pred_check
          %p895 = pneg %p110
        $region54: #{ae_forward.1} parent=51 // pred_check_branch
          %897 = sbr.rel (%p895) target = $region56
        $region55: #{ae_forward.1} parent=51 // pred_region
          %p898 = scmp.lt.s32.totalorder %s19, 1
          %s899 = scalar_select %p898, %s19, 1
          %s900 = smul.addr %s899, 4
          %s901 = scalar_lea.vmem %s3, %s900
        $region56: #{ae_forward.1} parent=51 // pred_fallthru
          _
      $region52: #{ae_forward.1} parent=5 // pred_fallthru
        _
    $region6: #{ae_forward.1} parent=1 // loop_footer
      %s17 = sadd.s32 1, %s13
    $region7: #{ae_forward.1} parent=1 // loop_footer_branch
      %12 = sbr.rel target = $region3
    $region8: #{ae_forward.1} parent=1 // loop_exit
      _
    %902 = vsyncpa [#allocation3], 1
    %s903 = scalar_lea.sflag [#allocation3], 1
    %904 = vsyncpa %s903, 1
    %905 = vsyncpa [#allocation5], 1

</llo_original>
